<compile_context>
chip_gen: v6e
topology: v6e:2x2x1
jax: 0.10.0
libtpu: 0.0.40
codegen_flags: <defaults>
</compile_context>

<pallas_src>
import functools

import numpy as np
import jax
import jax.numpy as jnp
from jax import lax
from jax.experimental import pallas as pl
from jax.experimental.pallas import tpu as pltpu

EPS = 1e-5  # torch.nn.BatchNorm1d default eps


def _round_up(x, m):
    return ((x + m - 1) // m) * m


# ----------------------------- Pallas kernels -------------------------------

def _stem_pool_kernel(p_ref, w_ref, b_ref, o_ref, acc_ref, *, ts, true_s, inv_s):
    """Fused conv-stem (im2col GEMM) + bias + ReLU + global average pool.

    grid = (B, S_pad // ts). The pooled (B_pad, C_pad) output block is resident across
    the whole grid (its index_map is constant); acc_ref accumulates one image's sum.
    """
    b = pl.program_id(0)
    s = pl.program_id(1)

    @pl.when(jnp.logical_and(b == 0, s == 0))
    def _():
        o_ref[...] = jnp.zeros_like(o_ref)

    @pl.when(s == 0)
    def _():
        acc_ref[...] = jnp.zeros_like(acc_ref)

    # (ts, K_pad) bf16 @ (K_pad, C_pad) bf16 -> f32 accumulation on the MXU.
    y = jnp.dot(p_ref[...], w_ref[...], preferred_element_type=jnp.float32)
    y = jnp.maximum(y + b_ref[...], 0.0)

    # Mask spatial rows that are only S -> S_pad padding: padded patch rows are zero,
    # but ReLU(bias) is not, so they must not contribute to the pooled sum.
    row = s * ts + lax.broadcasted_iota(jnp.int32, (ts, 1), 0)
    y = jnp.where(row < true_s, y, 0.0)

    acc_ref[...] += jnp.sum(y, axis=0, keepdims=True)

    @pl.when(s == pl.num_programs(1) - 1)
    def _():
        o_ref[pl.ds(b, 1), :] = acc_ref[...] * inv_s


def _head_kernel(f_ref, w_ref, b_ref, g_ref, beta_ref, o_ref):
    """pooled (B, C_pad) -> Linear(embed) -> BatchNorm1d (train-mode batch statistics)."""
    y = jnp.dot(f_ref[...], w_ref[...], preferred_element_type=jnp.float32)
    y = y + b_ref[...]
    mu = jnp.mean(y, axis=0, keepdims=True)
    var = jnp.mean((y - mu) ** 2, axis=0, keepdims=True)     # biased variance (torch fwd)
    o_ref[...] = g_ref[...] * (y - mu) * lax.rsqrt(var + EPS) + beta_ref[...]


# ------------------------------ wrappers -------------------------------------

def stem_pool(patches, w_flat, bias, *, true_s, ts):
    """patches: (B, S_pad, K_pad) bf16, w_flat: (K_pad, C_pad) bf16, bias: (1, C_pad) f32."""
    B, S_pad, K_pad = patches.shape
    C_pad = w_flat.shape[1]
    B_pad = _round_up(B, 8)
    n_s = S_pad // ts
    kernel = functools.partial(_stem_pool_kernel, ts=ts, true_s=true_s,
                               inv_s=np.float32(1.0 / true_s))
    pooled = pl.pallas_call(
        kernel,
        out_shape=jax.ShapeDtypeStruct((B_pad, C_pad), jnp.float32),
        grid=(B, n_s),
        in_specs=[
            pl.BlockSpec((None, ts, K_pad), lambda b, s: (b, s, 0)),   # patch tile (pipelined)
            pl.BlockSpec((K_pad, C_pad), lambda b, s: (0, 0)),         # packed conv weights
            pl.BlockSpec((1, C_pad), lambda b, s: (0, 0)),             # conv bias
        ],
        out_specs=pl.BlockSpec((B_pad, C_pad), lambda b, s: (0, 0)),   # resident pooled acc
        scratch_shapes=[pltpu.VMEM((1, C_pad), jnp.float32)],
        compiler_params=pltpu.CompilerParams(
            # pooled output block is resident across both axes -> both must be 'arbitrary'
            dimension_semantics=("arbitrary", "arbitrary"),
            vmem_limit_bytes=32 * 1024 * 1024,   # tile budget also fits v7x's 64 MiB VMEM/TC
        ),
    )(patches, w_flat, bias)
    return pooled[:B]


def head(pooled, w_e, b_e, gamma, beta, *, embed_size):
    """pooled: (B, C_pad) f32; all params lane-dense (padded to multiples of 128)."""
    B, C_pad = pooled.shape
    E_pad = w_e.shape[1]
    out = pl.pallas_call(
        _head_kernel,
        out_shape=jax.ShapeDtypeStruct((B, E_pad), jnp.float32),
        grid=(1,),
        in_specs=[pl.BlockSpec((B, C_pad), lambda i: (0, 0)),
                  pl.BlockSpec((C_pad, E_pad), lambda i: (0, 0)),
                  pl.BlockSpec((1, E_pad), lambda i: (0, 0)),
                  pl.BlockSpec((1, E_pad), lambda i: (0, 0)),
                  pl.BlockSpec((1, E_pad), lambda i: (0, 0))],
        out_specs=pl.BlockSpec((B, E_pad), lambda i: (0, 0)),
        compiler_params=pltpu.CompilerParams(dimension_semantics=("arbitrary",)),
    )(pooled, w_e, b_e, gamma, beta)
    return out[:, :embed_size]


# ------------------------------ glue (plain JAX) -----------------------------

def _im2col(x, kh, kw, stride, pad):
    """NCHW -> (B, OH*OW, Cin*KH*KW) patch rows with (c, kh, kw) feature ordering."""
    B, C, H, W = x.shape
    xp = jnp.pad(x, ((0, 0), (0, 0), (pad, pad), (pad, pad)))
    OH = (H + 2 * pad - kh) // stride + 1
    OW = (W + 2 * pad - kw) // stride + 1
    cols = []
    for i in range(kh):
        for j in range(kw):
            cols.append(xp[:, :, i:i + stride * OH:stride, j:j + stride * OW:stride])
    p = jnp.stack(cols, axis=0)                 # (KH*KW, B, C, OH, OW)
    p = jnp.transpose(p, (1, 3, 4, 2, 0))       # (B, OH, OW, C, KH*KW)
    return p.reshape(B, OH * OW, C * kh * kw), OH, OW


def encoder_cnn_forward(images, params, *, embed_size, kh=7, kw=7, stride=2, pad=3, ts=256):
    patches, OH, OW = _im2col(images, kh, kw, stride, pad)      # (B, S, K) f32
    B, S, K = patches.shape
    K_pad = params["w_conv_flat"].shape[0]
    ts = min(ts, _round_up(S, 16))          # bf16 sublane packing -> spatial tile % 16 == 0
    assert ts % 16 == 0
    S_pad = _round_up(S, ts)
    patches = jnp.pad(patches, ((0, 0), (0, S_pad - S), (0, K_pad - K)))
    patches = patches.astype(jnp.bfloat16)  # bf16 MXU operands; accumulation stays f32
    pooled = stem_pool(patches, params["w_conv_flat"], params["b_conv"], true_s=S, ts=ts)
    return head(pooled, params["w_embed"], params["b_embed"],
                params["gamma"], params["beta"], embed_size=embed_size)


def pack_params(raw, *, k_align=128, lane=128):
    """Zero-pad weights to MXU-/lane-aligned shapes (numerically exact)."""
    cstem, cin, kh, kw = raw["w_conv"].shape
    K = cin * kh * kw
    E = raw["w_embed"].shape[1]
    K_pad = _round_up(K, k_align)        # 147 -> 256
    C_pad = _round_up(cstem, lane)       # 32  -> 128
    E_pad = _round_up(E, lane)           # 32  -> 128
    w_flat = raw["w_conv"].reshape(cstem, K).T                 # (K, Cstem), (c,kh,kw) order
    return {
        "w_conv_flat": jnp.pad(w_flat, ((0, K_pad - K), (0, C_pad - cstem))).astype(jnp.bfloat16),
        "b_conv": jnp.pad(raw["b_conv"], ((0, 0), (0, C_pad - cstem))),
        "w_embed": jnp.pad(raw["w_embed"], ((0, C_pad - cstem), (0, E_pad - E))),
        "b_embed": jnp.pad(raw["b_embed"], ((0, 0), (0, E_pad - E))),
        "gamma": jnp.pad(raw["gamma"], ((0, 0), (0, E_pad - E))),
        "beta": jnp.pad(raw["beta"], ((0, 0), (0, E_pad - E))),
    }


def reference(images, raw):
    """Pure-JAX f32 reference reproducing the same forward semantics."""
    out = lax.conv_general_dilated(images, raw["w_conv"], (2, 2), ((3, 3), (3, 3)),
                                   dimension_numbers=("NCHW", "OIHW", "NCHW"))
    out = jnp.maximum(out + raw["b_conv"].reshape(1, -1, 1, 1), 0.0)
    pooled = out.mean(axis=(2, 3))
    y = pooled @ raw["w_embed"] + raw["b_embed"]
    mu = y.mean(0, keepdims=True)
    var = ((y - mu) ** 2).mean(0, keepdims=True)
    return raw["gamma"] * (y - mu) / jnp.sqrt(var + EPS) + raw["beta"]


# ------------------------------ main ------------------------------------------

if __name__ == "__main__":
    B, Cin, H, W = 8, 3, 16, 16       # small NCHW images (B=8 keeps BN batch stats stable)
    Cstem = 32                        # stand-in for resnet trunk output channels at small scale
    EMBED = 32                        # embed_size
    KH = KW = 7

    key = jax.random.PRNGKey(0)
    k1, k2, k3, k4, kx = jax.random.split(key, 5)
    raw = {
        "w_conv": jax.random.normal(k1, (Cstem, Cin, KH, KW), jnp.float32) * 0.1,
        "b_conv": jax.random.normal(k2, (1, Cstem), jnp.float32) * 0.01,
        "w_embed": jax.random.normal(k3, (Cstem, EMBED), jnp.float32) / np.sqrt(Cstem),
        "b_embed": jax.random.normal(k4, (1, EMBED), jnp.float32) * 0.01,
        "gamma": jnp.ones((1, EMBED), jnp.float32),   # torch BatchNorm1d default init
        "beta": jnp.zeros((1, EMBED), jnp.float32),
    }
    params = pack_params(raw)
    images = jax.random.normal(kx, (B, Cin, H, W), jnp.float32)

    # ts=48 (multiple of 16, not dividing S=64) exercises multi-tile accumulation + masking.
    out = jax.block_until_ready(encoder_cnn_forward(images, params, embed_size=EMBED, ts=48))

    assert out.shape == (B, EMBED), out.shape
    assert out.dtype == jnp.float32, out.dtype

    ref = jax.block_until_ready(reference(images, raw))
    np.testing.assert_allclose(np.asarray(out), np.asarray(ref), rtol=5e-2, atol=5e-2)

    print("KERNEL_OK")
</pallas_src>

<mosaic_0001>
module attributes {stable_mosaic.version = 11 : i64} {
  func.func @_stem_pool_kernel(%arg0: i32, %arg1: i32, %arg2: memref<1x48x256xbf16, #tpu.memory_space<vmem>>, %arg3: memref<256x128xbf16, #tpu.memory_space<vmem>>, %arg4: memref<1x128xf32, #tpu.memory_space<vmem>>, %arg5: memref<8x128xf32, #tpu.memory_space<vmem>>, %arg6: memref<1x128xf32, #tpu.memory_space<vmem>>) attributes {dimension_semantics = [#tpu.dimension_semantics<arbitrary>, #tpu.dimension_semantics<arbitrary>], iteration_bounds = array<i64: 8, 2>, scalar_prefetch = 0 : i64, scratch_operands = 1 : i64, tpu.core_type = #tpu.core_type<tc>, window_params = [{transform_indices = @transform_0, window_bounds = array<i64: 1, 48, 256>}, {pipeline_mode = #tpu.pipeline_mode<synchronous>, transform_indices = @transform_1, window_bounds = array<i64: 256, 128>}, {pipeline_mode = #tpu.pipeline_mode<synchronous>, transform_indices = @transform_2, window_bounds = array<i64: 1, 128>}, {pipeline_mode = #tpu.pipeline_mode<synchronous>, transform_indices = @transform_3, window_bounds = array<i64: 8, 128>}]} {
    %c0_i32 = arith.constant 0 : i32
    %0 = arith.cmpi eq, %arg0, %c0_i32 : i32
    %c0_i32_0 = arith.constant 0 : i32
    %1 = arith.cmpi eq, %arg1, %c0_i32_0 : i32
    %2 = arith.andi %0, %1 : i1
    %3 = arith.extui %2 : i1 to i32
    %c0_i32_1 = arith.constant 0 : i32
    %4 = arith.cmpi ne, %3, %c0_i32_1 : i32
    scf.if %4 {
      %cst_18 = arith.constant 0.000000e+00 : f32
      %35 = vector.broadcast %cst_18 : f32 to vector<8x128xf32>
      %c0_19 = arith.constant 0 : index
      %c0_20 = arith.constant 0 : index
      %36 = vector.load %arg5[%c0_19, %c0_20] : memref<8x128xf32, #tpu.memory_space<vmem>>, vector<8x128xf32>
      tpu.vector_store %arg5[%c0_19, %c0_20], %35 {strides = array<i32>} : memref<8x128xf32, #tpu.memory_space<vmem>>, vector<8x128xf32>,
    } else {
    }
    %c0_i32_2 = arith.constant 0 : i32
    %5 = arith.cmpi eq, %arg1, %c0_i32_2 : i32
    %6 = arith.extui %5 : i1 to i32
    %c0_i32_3 = arith.constant 0 : i32
    %7 = arith.cmpi ne, %6, %c0_i32_3 : i32
    scf.if %7 {
      %cst_18 = arith.constant 0.000000e+00 : f32
      %35 = vector.broadcast %cst_18 : f32 to vector<1x128xf32>
      %c0_19 = arith.constant 0 : index
      %c0_20 = arith.constant 0 : index
      %36 = vector.load %arg6[%c0_19, %c0_20] : memref<1x128xf32, #tpu.memory_space<vmem>>, vector<1x128xf32>
      tpu.vector_store %arg6[%c0_19, %c0_20], %35 {strides = array<i32>} : memref<1x128xf32, #tpu.memory_space<vmem>>, vector<1x128xf32>,
    } else {
    }
    %c0 = arith.constant 0 : index
    %c0_4 = arith.constant 0 : index
    %c0_5 = arith.constant 0 : index
    %8 = vector.load %arg2[%c0, %c0_4, %c0_5] : memref<1x48x256xbf16, #tpu.memory_space<vmem>>, vector<1x48x256xbf16>
    %9 = vector.shape_cast %8 : vector<1x48x256xbf16> to vector<48x256xbf16>
    %c0_6 = arith.constant 0 : index
    %c0_7 = arith.constant 0 : index
    %10 = vector.load %arg3[%c0_6, %c0_7] : memref<256x128xbf16, #tpu.memory_space<vmem>>, vector<256x128xbf16>
    %cst = arith.constant dense<0.000000e+00> : vector<48x128xf32>
    %11 = tpu.matmul %9, %10, %cst {dimension_numbers = #tpu.dot_dimension_numbers<[1], [0], [0], [1], [0, 0, 1, 1], [], []>} : vector<48x256xbf16>, vector<256x128xbf16>, vector<48x128xf32> -> vector<48x128xf32>
    %c0_8 = arith.constant 0 : index
    %c0_9 = arith.constant 0 : index
    %12 = vector.load %arg4[%c0_8, %c0_9] : memref<1x128xf32, #tpu.memory_space<vmem>>, vector<1x128xf32>
    %13 = vector.broadcast %12 : vector<1x128xf32> to vector<48x128xf32>
    %14 = arith.addf %11, %13 : vector<48x128xf32>
    %cst_10 = arith.constant 0.000000e+00 : f32
    %15 = vector.broadcast %cst_10 : f32 to vector<48x128xf32>
    %16 = arith.maximumf %14, %15 : vector<48x128xf32>
    %c48_i32 = arith.constant 48 : i32
    %17 = arith.muli %arg1, %c48_i32 : i32
    %18 = tpu.iota {dimensions = array<i32: 0>} : vector<48x1xi32>
    %19 = vector.broadcast %17 : i32 to vector<48x1xi32>
    %20 = arith.addi %19, %18 : vector<48x1xi32>
    %c64_i32 = arith.constant 64 : i32
    %21 = vector.broadcast %c64_i32 : i32 to vector<48x1xi32>
    %22 = arith.cmpi slt, %20, %21 : vector<48x1xi32>
    %cst_11 = arith.constant 0.000000e+00 : f32
    %23 = vector.shape_cast %22 : vector<48x1xi1> to vector<48x1xi1>
    %24 = vector.broadcast %23 : vector<48x1xi1> to vector<48x128xi1>
    %25 = vector.broadcast %cst_11 : f32 to vector<48x128xf32>
    %26 = arith.select %24, %16, %25 : vector<48x128xi1>, vector<48x128xf32>
    %c0_12 = arith.constant 0 : index
    %c0_13 = arith.constant 0 : index
    %27 = vector.load %arg6[%c0_12, %c0_13] : memref<1x128xf32, #tpu.memory_space<vmem>>, vector<1x128xf32>
    %cst_14 = arith.constant dense<0.000000e+00> : vector<128xf32>
    %28 = vector.multi_reduction <add>, %26, %cst_14 [0] : vector<48x128xf32> to vector<128xf32>
    %29 = vector.shape_cast %28 : vector<128xf32> to vector<1x128xf32>
    %30 = arith.addf %27, %29 : vector<1x128xf32>
    %c0_15 = arith.constant 0 : index
    %c0_16 = arith.constant 0 : index
    %31 = vector.load %arg6[%c0_15, %c0_16] : memref<1x128xf32, #tpu.memory_space<vmem>>, vector<1x128xf32>
    tpu.vector_store %arg6[%c0_15, %c0_16], %30 {strides = array<i32>} : memref<1x128xf32, #tpu.memory_space<vmem>>, vector<1x128xf32>,
    %c1_i32 = arith.constant 1 : i32
    %32 = arith.cmpi eq, %arg1, %c1_i32 : i32
    %33 = arith.extui %32 : i1 to i32
    %c0_i32_17 = arith.constant 0 : i32
    %34 = arith.cmpi ne, %33, %c0_i32_17 : i32
    scf.if %34 {
      %c0_18 = arith.constant 0 : index
      %c0_19 = arith.constant 0 : index
      %35 = vector.load %arg6[%c0_18, %c0_19] : memref<1x128xf32, #tpu.memory_space<vmem>>, vector<1x128xf32>
      %cst_20 = arith.constant 1.562500e-02 : f32
      %36 = vector.broadcast %cst_20 : f32 to vector<1x128xf32>
      %37 = arith.mulf %35, %36 : vector<1x128xf32>
      %38 = arith.index_cast %arg0 : i32 to index
      %c0_21 = arith.constant 0 : index
      %39 = vector.load %arg5[%38, %c0_21] : memref<8x128xf32, #tpu.memory_space<vmem>>, vector<1x128xf32>
      tpu.vector_store %arg5[%38, %c0_21], %37 {strides = array<i32>} : memref<8x128xf32, #tpu.memory_space<vmem>>, vector<1x128xf32>,
    } else {
    }
    return
  }
  func.func @transform_0(%arg0: i32, %arg1: i32) -> (i32, i32, i32) {
    %c0_i32 = arith.constant 0 : i32
    %c0_i32_0 = arith.constant 0 : i32
    return %arg0, %arg1, %c0_i32 : i32, i32, i32
  }
  func.func @transform_1(%arg0: i32, %arg1: i32) -> (i32, i32) {
    %c0_i32 = arith.constant 0 : i32
    %c0_i32_0 = arith.constant 0 : i32
    %c0_i32_1 = arith.constant 0 : i32
    return %c0_i32, %c0_i32_0 : i32, i32
  }
  func.func @transform_2(%arg0: i32, %arg1: i32) -> (i32, i32) {
    %c0_i32 = arith.constant 0 : i32
    %c0_i32_0 = arith.constant 0 : i32
    %c0_i32_1 = arith.constant 0 : i32
    return %c0_i32, %c0_i32_0 : i32, i32
  }
  func.func @transform_3(%arg0: i32, %arg1: i32) -> (i32, i32) {
    %c0_i32 = arith.constant 0 : i32
    %c0_i32_0 = arith.constant 0 : i32
    %c0_i32_1 = arith.constant 0 : i32
    return %c0_i32, %c0_i32_0 : i32, i32
  }
}

</mosaic_0001>

<llo_original>
// kernel: tpu_custom_call.1
$region0: #{tpu_custom_call.1}
  #allocation0 [shape = 'u32[]', space=smem, size = 0x4, offset = 0x4, fixed_abs, tag = 'smem constant byte address 0x4 - core index']
  #allocation1 [shape = 'u32[144,128]{1,0:T(1,128)}', space=vmem, size = 0x12000, scoped, tag = 'internal scratch']
  #allocation2 [shape = 'f32[1,128]{1,0:T(1,128)}', space=vmem, size = 0x200, scoped, tag = 'scratch operand']
  %s0 = inlined_call_operand.hbm [shape: bf16[8,96,256], index: 0, kind: input, shape index: {}]
  %s1 = inlined_call_operand.hbm [shape: bf16[256,128], index: 1, kind: input, shape index: {}]
  %s2 = inlined_call_operand.vmem [shape: f32[1,128], index: 2, kind: input, shape index: {}]
  %s3 = inlined_call_operand.hbm [shape: f32[8,128], index: 3, kind: output, shape index: {}]
  %s4 = sld [smem:[#allocation0]]
  $region65: #{tpu_custom_call.1} parent=0
    _
  %s6 = ssub.s32 1, %s4
  %s7 = scalar_select 0, %s6, %s4
  $region1: #{tpu_custom_call.1} parent=0
    #allocation3 [shape = 'u8[49152]{0}', space=vmem, size = 0xc000, scoped, tag = 'input window, operand 0']
    #allocation4 [shape = 's32[2]{0}', space=sflag, size = 0x8, scoped, tag = 'scoped memory for tpu_custom_call.1']
    #allocation5 [shape = 's32[2]{0}', space=sflag, size = 0x8, scoped, tag = 'scoped memory for tpu_custom_call.1']
    #allocation6 [shape = 'u8[65536]{0}', space=vmem, size = 0x10000, scoped, tag = 'input window, operand 1, single buffered']
    #allocation7 [shape = 's32[1]{0}', space=sflag, size = 0x4, scoped, tag = 'scoped memory for tpu_custom_call.1']
    #allocation8 [shape = 'u8[4096]{0}', space=vmem, size = 0x1000, scoped, tag = 'output window, operand 0, single buffered']
    %8 = vsyncpa [#allocation4], 0
    %s9 = scalar_lea.sflag [#allocation4], 1
    %10 = vsyncpa %s9, 0
    %11 = vsyncpa [#allocation7], 0
    %12 = vsyncpa [#allocation5], 0
    loop: start=0, step=1, limit=18
    $region2: #{tpu_custom_call.1} parent=1 // loop_pre_header
      _
    $region3: #{tpu_custom_call.1} parent=1 // loop_header
      %s14 = sphi 0, %s18
      %p15 = scmp.ge.s32.totalorder %s14, 18
      %s21 = sphi 0, %s33
      %s22 = sphi 0, %s29
      %s23 = sphi 0, %s21
      %s24 = sphi 0, %s22
      %s25 = sphi 0, %s23
      %s26 = sphi 0, %s24
      %s38 = sphi 0, %s40
      %s41 = sphi 0, %s38
      %s42 = sphi 0, %s41
      %s58 = sphi 0, %s42
      %s62 = sphi 0, %s62
      %s64 = sphi 0, %s62
      %s65 = sphi 0, %s64
      %s79 = sphi 0, %s65
      %s83 = sphi 0, %s83
      %s85 = sphi 0, %s83
      %s86 = sphi 0, %s85
      %s100 = sphi 0, %s86
      %s104 = sphi 0, %s104
      %s106 = sphi 0, %s104
      %s107 = sphi 0, %s106
      %s121 = sphi 0, %s107
    $region4: #{tpu_custom_call.1} parent=1 // loop_header_branch
      %17 = sbr.rel (%p15) target = $region8
    $region5: #{tpu_custom_call.1} parent=1 // loop_body
      %s19 = ssub.s32 %s14, 1
      %s20 = ssub.s32 %s14, 2
      %s27 = sadd.s32 1, %s22
      %p28 = scmp.ge.s32.totalorder %s27, 2
      %s29 = scalar_select %p28, 0, %s27
      %s30 = sadd.s32 1, %s21
      %s31 = scalar_select %p28, %s30, %s21
      %p32 = scmp.ge.s32.totalorder %s31, 8
      %s33 = scalar_select %p32, 0, %s31
      %s34 = ssub.s32 %s21, %s33
      %s35 = ssub.s32 %s22, %s29
      %s36 = sor.u32 %s34, %s35
      %p37 = scmp.eq.s32.totalorder %s36, 0
      %s39 = sadd.s32 %s38, 1
      %s40 = scalar_select %p37, %s38, %s39
      %p43 = pneg %p37
      %p44 = scmp.eq.s32.totalorder %s14, 15
      %p45 = por %p43, %p44
      %p46 = scmp.ne.s32.totalorder %s38, %s41
      %p47 = scmp.eq.s32.totalorder %s14, 0
      %p48 = por %p46, %p47
      %p49 = scmp.ne.s32.totalorder %s38, %s41
      %p50 = scmp.eq.s32.totalorder %s19, 15
      %p51 = por %p49, %p50
      %p52 = scmp.ne.s32.totalorder %s41, %s42
      %p53 = scmp.eq.s32.totalorder %s19, 0
      %p54 = por %p52, %p53
      %p55 = scmp.ne.s32.totalorder %s41, %s42
      %p56 = scmp.eq.s32.totalorder %s20, 15
      %p57 = por %p55, %p56
      %p59 = scmp.ne.s32.totalorder %s42, %s58
      %p60 = scmp.eq.s32.totalorder %s20, 0
      %p61 = por %p59, %p60
      %s63 = sadd.s32 %s62, 1
      %p66 = scmp.eq.s32.totalorder %s14, 15
      %p67 = scmp.ne.s32.totalorder %s62, %s64
      %p68 = scmp.eq.s32.totalorder %s14, 0
      %p69 = por %p67, %p68
      %p70 = scmp.ne.s32.totalorder %s62, %s64
      %p71 = scmp.eq.s32.totalorder %s19, 15
      %p72 = por %p70, %p71
      %p73 = scmp.ne.s32.totalorder %s64, %s65
      %p74 = scmp.eq.s32.totalorder %s19, 0
      %p75 = por %p73, %p74
      %p76 = scmp.ne.s32.totalorder %s64, %s65
      %p77 = scmp.eq.s32.totalorder %s20, 15
      %p78 = por %p76, %p77
      %p80 = scmp.ne.s32.totalorder %s65, %s79
      %p81 = scmp.eq.s32.totalorder %s20, 0
      %p82 = por %p80, %p81
      %s84 = sadd.s32 %s83, 1
      %p87 = scmp.eq.s32.totalorder %s14, 15
      %p88 = scmp.ne.s32.totalorder %s83, %s85
      %p89 = scmp.eq.s32.totalorder %s14, 0
      %p90 = por %p88, %p89
      %p91 = scmp.ne.s32.totalorder %s83, %s85
      %p92 = scmp.eq.s32.totalorder %s19, 15
      %p93 = por %p91, %p92
      %p94 = scmp.ne.s32.totalorder %s85, %s86
      %p95 = scmp.eq.s32.totalorder %s19, 0
      %p96 = por %p94, %p95
      %p97 = scmp.ne.s32.totalorder %s85, %s86
      %p98 = scmp.eq.s32.totalorder %s20, 15
      %p99 = por %p97, %p98
      %p101 = scmp.ne.s32.totalorder %s86, %s100
      %p102 = scmp.eq.s32.totalorder %s20, 0
      %p103 = por %p101, %p102
      %s105 = sadd.s32 %s104, 1
      %p108 = scmp.eq.s32.totalorder %s14, 15
      %p109 = scmp.ne.s32.totalorder %s104, %s106
      %p110 = scmp.eq.s32.totalorder %s14, 0
      %p111 = por %p109, %p110
      %p112 = scmp.ne.s32.totalorder %s104, %s106
      %p113 = scmp.eq.s32.totalorder %s19, 15
      %p114 = por %p112, %p113
      %p115 = scmp.ne.s32.totalorder %s106, %s107
      %p116 = scmp.eq.s32.totalorder %s19, 0
      %p117 = por %p115, %p116
      %p118 = scmp.ne.s32.totalorder %s106, %s107
      %p119 = scmp.eq.s32.totalorder %s20, 15
      %p120 = por %p118, %p119
      %p122 = scmp.ne.s32.totalorder %s107, %s121
      %p123 = scmp.eq.s32.totalorder %s20, 0
      %p124 = por %p122, %p123
      %p125 = scmp.le.s32.totalorder 1, %s14
      %p126 = scmp.lt.s32.totalorder %s14, 17
      %p127 = pnand %p125, %p126
      %p128 = pneg %p127
      // Predicated region
      $region9: #{tpu_custom_call.1} parent=5 // pred_check
        _
      $region10: #{tpu_custom_call.1} parent=5 // pred_check_branch
        %130 = sbr.rel (%p127) target = $region12
      $region11: #{tpu_custom_call.1} parent=5 // pred_region
        %s131 = ssub.s32 %s14, 1
        // Predicated region
        $region13: #{tpu_custom_call.1} parent=11 // pred_check
          %p132 = pneg %p75
        $region14: #{tpu_custom_call.1} parent=11 // pred_check_branch
          %134 = sbr.rel (%p132) target = $region16
        $region15: #{tpu_custom_call.1} parent=11 // pred_region
          %s136 = ssub.s32 2048, 2048
          %137 = vsyncadd [#allocation7], %s136
          %s138 = sshll.u32 [#allocation6], 4
          %s139 = int_to_ptr.vmem [resolvable:$true] %s138
          %144 = dma.hbm_to_vmem [thread:$0]  %s1, 2048, %s139, [#allocation7], 64, 64, 4
        $region16: #{tpu_custom_call.1} parent=11 // pred_fallthru
          _
        // Predicated region
        $region17: #{tpu_custom_call.1} parent=11 // pred_check
          %p145 = pneg %p96
        $region18: #{tpu_custom_call.1} parent=11 // pred_check_branch
          %147 = sbr.rel (%p145) target = $region20
        $region19: #{tpu_custom_call.1} parent=11 // pred_region
          _
        $region20: #{tpu_custom_call.1} parent=11 // pred_fallthru
          _
      $region12: #{tpu_custom_call.1} parent=5 // pred_fallthru
        _
      %p148 = scmp.lt.s32.totalorder %s14, 16
      // Predicated region
      $region21: #{tpu_custom_call.1} parent=5 // pred_check
        %p149 = pneg %p148
      $region22: #{tpu_custom_call.1} parent=5 // pred_check_branch
        %151 = sbr.rel (%p149) target = $region24
      $region23: #{tpu_custom_call.1} parent=5 // pred_region
        // Predicated region
        $region25: #{tpu_custom_call.1} parent=23 // pred_check
          %p152 = pneg %p48
        $region26: #{tpu_custom_call.1} parent=23 // pred_check_branch
          %154 = sbr.rel (%p152) target = $region28
        $region27: #{tpu_custom_call.1} parent=23 // pred_region
          %s155 = sand.u32 %s38, 1
          %s156 = scalar_lea.sflag [#allocation4], %s155
          %s157 = sand.u32 %s38, 1
          %s158 = smul.addr %s157, 48
          %s159 = scalar_lea.vmem [#allocation3], %s158
          %s160 = smul.u32 6, %s22
          %s162 = ssub.s32 768, 768
          %163 = vsyncadd %s156, %s162
          %s164 = smul.addr %s160, 2
          %s165 = smul.addr %s21, 24
          %s166 = sadd.s32 %s164, %s165
          %s167 = smul.addr %s166, 64
          %s168 = scalar_lea.hbm %s0, %s167
          %s169 = sshll.u32 %s159, 4
          %s170 = int_to_ptr.vmem [resolvable:$true] %s169
          %175 = dma.hbm_to_vmem [thread:$0]  %s168, 768, %s170, %s156, 128, 128, 8
        $region28: #{tpu_custom_call.1} parent=23 // pred_fallthru
          _
      $region24: #{tpu_custom_call.1} parent=5 // pred_fallthru
        _
      %p176 = scmp.le.s32.totalorder 1, %s14
      %p177 = scmp.lt.s32.totalorder %s14, 17
      %p178 = pnand %p176, %p177
      %p179 = pneg %p178
      // Predicated region
      $region29: #{tpu_custom_call.1} parent=5 // pred_check
        _
      $region30: #{tpu_custom_call.1} parent=5 // pred_check_branch
        %181 = sbr.rel (%p178) target = $region32
      $region31: #{tpu_custom_call.1} parent=5 // pred_region
        %s182 = ssub.s32 %s14, 1
        %s183 = sand.u32 %s41, 1
        %s184 = scalar_lea.sflag [#allocation4], %s183
        %s185 = sand.u32 %s41, 1
        %s186 = smul.addr %s185, 48
        %s187 = scalar_lea.vmem [#allocation3], %s186
        // Predicated region
        $region33: #{tpu_custom_call.1} parent=31 // pred_check
          %p188 = pneg %p54
        $region34: #{tpu_custom_call.1} parent=31 // pred_check_branch
          %190 = sbr.rel (%p188) target = $region36
        $region35: #{tpu_custom_call.1} parent=31 // pred_region
          %191 = dma.done %s184, 768
        $region36: #{tpu_custom_call.1} parent=31 // pred_fallthru
          _
        // Predicated region
        $region37: #{tpu_custom_call.1} parent=31 // pred_check
          %p192 = pneg %p75
        $region38: #{tpu_custom_call.1} parent=31 // pred_check_branch
          %194 = sbr.rel (%p192) target = $region40
        $region39: #{tpu_custom_call.1} parent=31 // pred_region
          %195 = dma.done [#allocation7], 2048
        $region40: #{tpu_custom_call.1} parent=31 // pred_fallthru
          _
        %s196 = sand.u32 %s41, 1
        %s197 = scalar_lea.sflag [#allocation4], %s196
        %s198 = sand.u32 %s41, 1
        %s199 = smul.addr %s198, 48
        %s200 = scalar_lea.vmem [#allocation3], %s199
        %p201 = pneg %p54
        %p202 = pneg %p51
        %p203 = pneg %p75
        %p204 = pneg %p72
        %p205 = pneg %p96
        %p206 = pneg %p93
        %p207 = pneg %p117
        %p208 = pneg %p114
        %s209 = smul.u32 6, %s24
        %p211 = scmp.eq.s32.totalorder %s23, 0
        %p212 = scmp.eq.s32.totalorder %s24, 0
        %p213 = pnand %p211, %p212
        %p214 = pneg %p213
        // Predicated region
        $region41: #{tpu_custom_call.1} parent=31 // pred_check
          _
        $region42: #{tpu_custom_call.1} parent=31 // pred_check_branch
          %216 = sbr.rel (%p213) target = $region44
        $region43: #{tpu_custom_call.1} parent=31 // pred_region
          %217 = vst [vmem:[#allocation8] sm:$0xff] 0.0
        $region44: #{tpu_custom_call.1} parent=31 // pred_fallthru
          _
        // Predicated region
        $region45: #{tpu_custom_call.1} parent=31 // pred_check
          %p218 = pneg %p212
        $region46: #{tpu_custom_call.1} parent=31 // pred_check_branch
          %220 = sbr.rel (%p218) target = $region48
        $region47: #{tpu_custom_call.1} parent=31 // pred_region
          %221 = vst [vmem:[#allocation2] sm:$0x1] 0.0
        $region48: #{tpu_custom_call.1} parent=31 // pred_fallthru
          _
        %v222 = vld [vmem:[%s187] sm:$0xff]
        %v223 = vld [vmem:[%s187 + $0x8] sm:$0xff]
        %v224 = vld [vmem:[%s187 + $0x10] sm:$0xff]
        %v225 = vld [vmem:[%s187 + $0x18] sm:$0xff]
        %v226 = vld [vmem:[%s187 + $0x20] sm:$0xff]
        %v227 = vld [vmem:[%s187 + $0x28] sm:$0xff]
        %v228 = vld [vmem:[#allocation6] sm:$0xf]
        %v229 = vld [vmem:[#allocation6 + $0x4] sm:$0xf]
        %v230 = vld [vmem:[#allocation6 + $0x8] sm:$0xf]
        %v231 = vld [vmem:[#allocation6 + $0xc] sm:$0xf]
        %v232 = vld [vmem:[#allocation6 + $0x10] sm:$0xf]
        %v233 = vld [vmem:[#allocation6 + $0x14] sm:$0xf]
        %v234 = vld [vmem:[#allocation6 + $0x18] sm:$0xf]
        %v235 = vld [vmem:[#allocation6 + $0x1c] sm:$0xf]
        %v236 = vld [vmem:[#allocation6 + $0x20] sm:$0xf]
        %v237 = vld [vmem:[#allocation6 + $0x24] sm:$0xf]
        %v238 = vld [vmem:[#allocation6 + $0x28] sm:$0xf]
        %v239 = vld [vmem:[#allocation6 + $0x2c] sm:$0xf]
        %v240 = vld [vmem:[#allocation6 + $0x30] sm:$0xf]
        %v241 = vld [vmem:[#allocation6 + $0x34] sm:$0xf]
        %v242 = vld [vmem:[#allocation6 + $0x38] sm:$0xf]
        %v243 = vld [vmem:[#allocation6 + $0x3c] sm:$0xf]
        %v244 = vld [vmem:[#allocation6 + $0x40] sm:$0xf]
        %v245 = vld [vmem:[#allocation6 + $0x44] sm:$0xf]
        %v246 = vld [vmem:[#allocation6 + $0x48] sm:$0xf]
        %v247 = vld [vmem:[#allocation6 + $0x4c] sm:$0xf]
        %v248 = vld [vmem:[#allocation6 + $0x50] sm:$0xf]
        %v249 = vld [vmem:[#allocation6 + $0x54] sm:$0xf]
        %v250 = vld [vmem:[#allocation6 + $0x58] sm:$0xf]
        %v251 = vld [vmem:[#allocation6 + $0x5c] sm:$0xf]
        %v252 = vld [vmem:[#allocation6 + $0x60] sm:$0xf]
        %v253 = vld [vmem:[#allocation6 + $0x64] sm:$0xf]
        %v254 = vld [vmem:[#allocation6 + $0x68] sm:$0xf]
        %v255 = vld [vmem:[#allocation6 + $0x6c] sm:$0xf]
        %v256 = vld [vmem:[#allocation6 + $0x70] sm:$0xf]
        %v257 = vld [vmem:[#allocation6 + $0x74] sm:$0xf]
        %v258 = vld [vmem:[#allocation6 + $0x78] sm:$0xf]
        %v259 = vld [vmem:[#allocation6 + $0x7c] sm:$0xf]
        %v260 = vld [vmem:[%s2] sm:$0x1]
        %v262 = vlaneseq
        %v263 = vshrl.u32 %v262, 7
        %v264 = vsub.s32 0, %v263
        %v265 = vrot.slane %v260, %v264
        %v273 = vunpack.c.l.b16 %v222
        %v274 = vunpack.c.h.b16 %v222
        %v275 = vunpack.c.l.b16 %v223
        %v276 = vunpack.c.h.b16 %v223
        %v277 = vunpack.c.l.b16 %v224
        %v278 = vunpack.c.h.b16 %v224
        %v279 = vunpack.c.l.b16 %v225
        %v280 = vunpack.c.h.b16 %v225
        %v281 = vunpack.c.l.b16 %v226
        %v282 = vunpack.c.h.b16 %v226
        %v283 = vunpack.c.l.b16 %v227
        %v284 = vunpack.c.h.b16 %v227
        %v285 = vpack.c.b16 %v275, %v273
        %v286 = vpack.c.b16 %v276, %v274
        %v287 = vpack.c.b16 %v279, %v277
        %v288 = vpack.c.b16 %v280, %v278
        %v289 = vpack.c.b16 %v283, %v281
        %v290 = vpack.c.b16 %v284, %v282
        %v329 = vunpack.c.l.b16 %v228
        %v330 = vunpack.c.l.b16 %v229
        %v331 = vunpack.c.l.b16 %v230
        %v332 = vunpack.c.l.b16 %v231
        %v333 = vunpack.c.l.b16 %v232
        %v334 = vunpack.c.l.b16 %v233
        %v335 = vunpack.c.l.b16 %v234
        %v336 = vunpack.c.l.b16 %v235
        %v337 = vunpack.c.l.b16 %v236
        %v338 = vunpack.c.l.b16 %v237
        %v339 = vunpack.c.l.b16 %v238
        %v340 = vunpack.c.l.b16 %v239
        %v341 = vunpack.c.l.b16 %v240
        %v342 = vunpack.c.l.b16 %v241
        %v343 = vunpack.c.l.b16 %v242
        %v344 = vunpack.c.l.b16 %v243
        %v345 = vunpack.c.l.b16 %v244
        %v346 = vunpack.c.l.b16 %v245
        %v347 = vunpack.c.l.b16 %v246
        %v348 = vunpack.c.l.b16 %v247
        %v349 = vunpack.c.l.b16 %v248
        %v350 = vunpack.c.l.b16 %v249
        %v351 = vunpack.c.l.b16 %v250
        %v352 = vunpack.c.l.b16 %v251
        %v353 = vunpack.c.l.b16 %v252
        %v354 = vunpack.c.l.b16 %v253
        %v355 = vunpack.c.l.b16 %v254
        %v356 = vunpack.c.l.b16 %v255
        %v357 = vunpack.c.l.b16 %v256
        %v358 = vunpack.c.l.b16 %v257
        %v359 = vunpack.c.l.b16 %v258
        %v360 = vunpack.c.l.b16 %v259
        %v361 = vpack.c.b16 %v330, %v329
        %v362 = vpack.c.b16 %v332, %v331
        %v363 = vpack.c.b16 %v334, %v333
        %v364 = vpack.c.b16 %v336, %v335
        %v365 = vpack.c.b16 %v338, %v337
        %v366 = vpack.c.b16 %v340, %v339
        %v367 = vpack.c.b16 %v342, %v341
        %v368 = vpack.c.b16 %v344, %v343
        %v369 = vpack.c.b16 %v346, %v345
        %v370 = vpack.c.b16 %v348, %v347
        %v371 = vpack.c.b16 %v350, %v349
        %v372 = vpack.c.b16 %v352, %v351
        %v373 = vpack.c.b16 %v354, %v353
        %v374 = vpack.c.b16 %v356, %v355
        %v375 = vpack.c.b16 %v358, %v357
        %v376 = vpack.c.b16 %v360, %v359
        %393 = vmatprep.subr.bf16.mxu0 0
        %394 = vmatpush1.bf16.msra.mxu0 %v368
        %395 = vmatprep.subr.bf16.mxu0 0
        %396 = vmatpush1.bf16.msra.mxu0 %v367
        %397 = vmatprep.subr.bf16.mxu0 0
        %398 = vmatpush1.bf16.msra.mxu0 %v366
        %399 = vmatprep.subr.bf16.mxu0 0
        %400 = vmatpush1.bf16.msra.mxu0 %v365
        %401 = vmatprep.subr.bf16.mxu0 0
        %402 = vmatpush1.bf16.msra.mxu0 %v364
        %403 = vmatprep.subr.bf16.mxu0 0
        %404 = vmatpush1.bf16.msra.mxu0 %v363
        %405 = vmatprep.subr.bf16.mxu0 0
        %406 = vmatpush1.bf16.msra.mxu0 %v362
        %407 = vmatprep.subr.bf16.mxu0 0
        %408 = vmatpush1.bf16.msra.mxu0 %v361
        %409 = vmatprep.subr.bf16.mxu0 0
        %410 = vmatpush2.bf16.msra.mxu0 %v376
        %411 = vmatprep.subr.bf16.mxu0 0
        %412 = vmatpush2.bf16.msra.mxu0 %v375
        %413 = vmatprep.subr.bf16.mxu0 0
        %414 = vmatpush2.bf16.msra.mxu0 %v374
        %415 = vmatprep.subr.bf16.mxu0 0
        %416 = vmatpush2.bf16.msra.mxu0 %v373
        %417 = vmatprep.subr.bf16.mxu0 0
        %418 = vmatpush2.bf16.msra.mxu0 %v372
        %419 = vmatprep.subr.bf16.mxu0 0
        %420 = vmatpush2.bf16.msra.mxu0 %v371
        %421 = vmatprep.subr.bf16.mxu0 0
        %422 = vmatpush2.bf16.msra.mxu0 %v370
        %423 = vmatprep.subr.bf16.mxu0 0
        %424 = vmatpush2.bf16.msra.mxu0 %v369
        %425 = vmatprep.mubr.bf16.mxu0 %v286
        %426 = vmatmul.mubr.bf16.gmra.mxu0 %v285
        %v427 = vpop.f32.mrf.mxu0
        %v428 = vadd.f32 %v265, %v427
        %v429 = vpop.f32.mrf.mxu0
        %v430 = vpop.f32.mrf.mxu0
        %v431 = vadd.f32 %v265, %v430
        %v432 = vpop.f32.mrf.mxu0
        %433 = vmatprep.mubr.bf16.mxu0 %v288
        %434 = vmatmul.mubr.bf16.gmra.mxu0 %v287
        %v435 = vpop.f32.mrf.mxu0
        %v436 = vadd.f32 %v265, %v435
        %v437 = vpop.f32.mrf.mxu0
        %v438 = vpop.f32.mrf.mxu0
        %v439 = vadd.f32 %v265, %v438
        %v440 = vpop.f32.mrf.mxu0
        %441 = vmatprep.mubr.bf16.mxu0 %v290
        %442 = vmatmul.mubr.bf16.gmra.mxu0 %v289
        %v443 = vpop.f32.mrf.mxu0
        %v444 = vadd.f32 %v265, %v443
        %v445 = vpop.f32.mrf.mxu0
        %v446 = vpop.f32.mrf.mxu0
        %v447 = vadd.f32 %v265, %v446
        %v448 = vpop.f32.mrf.mxu0
        %449 = vdwg.mxu0
        %v450 = vmax.f32 %v428, 0.0
        %v451 = vmax.f32 %v431, 0.0
        %v452 = vmax.f32 %v436, 0.0
        %v453 = vmax.f32 %v439, 0.0
        %v454 = vmax.f32 %v444, 0.0
        %v455 = vmax.f32 %v447, 0.0
        %s456 = smul.u32 %s24, 48
        %v457 = vlaneseq
        %v458 = vshrl.u32 %v457, 7
        %v459 = vadd.s32 %v458, 8
        %v460 = vadd.s32 %v458, 16
        %v461 = vadd.s32 %v458, 24
        %v462 = vadd.s32 %v458, 32
        %v463 = vadd.s32 %v458, 40
        %v464 = vstv %s456
        %v465 = vadd.s32 %v464, %v458
        %v466 = vadd.s32 %v464, %v459
        %v467 = vadd.s32 %v464, %v460
        %v468 = vadd.s32 %v464, %v461
        %v469 = vadd.s32 %v464, %v462
        %v470 = vadd.s32 %v464, %v463
        %vm471 = vcmp.lt.s32.totalorder %v465, 64
        %vm472 = vcmp.lt.s32.totalorder %v466, 64
        %vm473 = vcmp.lt.s32.totalorder %v467, 64
        %vm474 = vcmp.lt.s32.totalorder %v468, 64
        %vm475 = vcmp.lt.s32.totalorder %v469, 64
        %vm476 = vcmp.lt.s32.totalorder %v470, 64
        %v477 = vsel %vm471, 1, 0
        %v478 = vsel %vm472, 1, 0
        %v479 = vsel %vm473, 1, 0
        %v480 = vsel %vm474, 1, 0
        %v481 = vsel %vm475, 1, 0
        %v482 = vsel %vm476, 1, 0
        %vm483 = vcmp.eq.s32.totalorder %v477, 1
        %vm484 = vcmp.eq.s32.totalorder %v478, 1
        %vm485 = vcmp.eq.s32.totalorder %v479, 1
        %vm486 = vcmp.eq.s32.totalorder %v480, 1
        %vm487 = vcmp.eq.s32.totalorder %v481, 1
        %vm488 = vcmp.eq.s32.totalorder %v482, 1
        %v489 = vsel %vm483, %v450, 0.0
        %v490 = vsel %vm484, %v451, 0.0
        %v491 = vsel %vm485, %v452, 0.0
        %v492 = vsel %vm486, %v453, 0.0
        %v493 = vsel %vm487, %v454, 0.0
        %v494 = vsel %vm488, %v455, 0.0
        %v495 = vld [vmem:[#allocation2] sm:$0x1]
        %v496 = vadd.f32 %v489, %v490
        %v497 = vadd.f32 %v496, %v491
        %v498 = vadd.f32 %v497, %v492
        %v499 = vadd.f32 %v498, %v493
        %v500 = vadd.f32 %v499, %v494
        %v501 = vrot.slane %v500, 4
        %v502 = vadd.f32 %v500, %v501
        %v503 = vrot.slane %v502, 2
        %v504 = vadd.f32 %v502, %v503
        %v505 = vrot.slane %v504, 1
        %v506 = vadd.f32 %v504, %v505
        %v507 = vadd.f32 %v495, %v506
        %508 = vst [vmem:[#allocation2] sm:$0x1] %v507
        %p509 = scmp.eq.s32.totalorder %s24, 1
        // Predicated region
        $region49: #{tpu_custom_call.1} parent=31 // pred_check
          %p510 = pneg %p509
        $region50: #{tpu_custom_call.1} parent=31 // pred_check_branch
          %512 = sbr.rel (%p510) target = $region52
        $region51: #{tpu_custom_call.1} parent=31 // pred_region
          %v513 = vld [vmem:[#allocation2] sm:$0x1]
          %v514 = vmul.f32 %v513, 0.015625
          %s515 = scalar_lea.vmem [#allocation8], %s23
          %516 = vst [vmem:[%s515] sm:$0x1] %v514
        $region52: #{tpu_custom_call.1} parent=31 // pred_fallthru
          _
        // Predicated region
        $region53: #{tpu_custom_call.1} parent=31 // pred_check
          %p517 = pneg %p114
        $region54: #{tpu_custom_call.1} parent=31 // pred_check_branch
          %519 = sbr.rel (%p517) target = $region56
        $region55: #{tpu_custom_call.1} parent=31 // pred_region
          %s521 = ssub.s32 128, 128
          %522 = vsyncadd [#allocation5], %s521
          %s524 = sshll.u32 [#allocation8], 4
          %s525 = int_to_ptr.vmem [resolvable:$true] %s524
          %527 = dma.vmem_to_hbm [thread:$0]  %s525, 128, %s3, [#allocation5]
        $region56: #{tpu_custom_call.1} parent=31 // pred_fallthru
          _
        // Predicated region
        $region57: #{tpu_custom_call.1} parent=31 // pred_check
          %p528 = pneg %p114
        $region58: #{tpu_custom_call.1} parent=31 // pred_check_branch
          %530 = sbr.rel (%p528) target = $region60
        $region59: #{tpu_custom_call.1} parent=31 // pred_region
          %531 = dma.done [#allocation5], 128
        $region60: #{tpu_custom_call.1} parent=31 // pred_fallthru
          _
      $region32: #{tpu_custom_call.1} parent=5 // pred_fallthru
        _
      %p532 = scmp.le.s32.totalorder 2, %s14
      // Predicated region
      $region61: #{tpu_custom_call.1} parent=5 // pred_check
        %p533 = pneg %p532
      $region62: #{tpu_custom_call.1} parent=5 // pred_check_branch
        %535 = sbr.rel (%p533) target = $region64
      $region63: #{tpu_custom_call.1} parent=5 // pred_region
        %s536 = ssub.s32 %s14, 2
      $region64: #{tpu_custom_call.1} parent=5 // pred_fallthru
        _
    $region6: #{tpu_custom_call.1} parent=1 // loop_footer
      %s18 = sadd.s32 1, %s14
    $region7: #{tpu_custom_call.1} parent=1 // loop_footer_branch
      %13 = sbr.rel target = $region3
    $region8: #{tpu_custom_call.1} parent=1 // loop_exit
      _
    %537 = vsyncpa [#allocation4], 1
    %s538 = scalar_lea.sflag [#allocation4], 1
    %539 = vsyncpa %s538, 1
    %540 = vsyncpa [#allocation7], 1
    %541 = vsyncpa [#allocation5], 1
    %s542 = scalar_lea.sflag [#allocation5], 1
    %543 = vsyncpa %s542, 1

</llo_original>
